<compile_context>
chip_gen: v6e
topology: v6e:2x2x1
jax: 0.10.0
libtpu: 0.0.40
codegen_flags: <defaults>
</compile_context>

<pallas_src>
import functools

import jax
import jax.numpy as jnp
from jax.experimental import pallas as pl
from jax.experimental.pallas import tpu as pltpu

LN_EPS = 1e-5


# ---------------------------------------------------------------------------
# helpers
# ---------------------------------------------------------------------------
def _round_up(v, m):
    return -(-v // m) * m


def _pad_to(a, shape):
    pads = [(0, s - d) for d, s in zip(a.shape, shape)]
    if any(p[1] for p in pads):
        return jnp.pad(a, pads)
    return a


# ---------------------------------------------------------------------------
# Pallas kernels
# ---------------------------------------------------------------------------
def _rel_conv_kernel(*refs, tn, d_act, has_boundary):
    """One generalized relational conv layer for one (batch, dst-tile) grid step.

    msg (VMEM scratch, built once per batch) : msg[r*N + s, :] = rel[r] * x[s]
    agg = adj2d @ msg (+ boundary)           (distmult message, sum aggregate)
    h   = ReLU(LayerNorm(x_dst @ W_self + agg @ W_agg + b)) + x_dst
    """
    if has_boundary:
        (x_ref, rel_ref, adj_ref, bnd_ref,
         ws_ref, wa_ref, b_ref, g_ref, beta_ref, out_ref, msg_ref) = refs
    else:
        (x_ref, rel_ref, adj_ref,
         ws_ref, wa_ref, b_ref, g_ref, beta_ref, out_ref, msg_ref) = refs
        bnd_ref = None

    t = pl.program_id(1)                               # dst-tile index (inner axis)

    # Build the stacked DistMult message tensor only on the first dst tile of each
    # batch element; it is reused (VMEM-resident) for every subsequent dst tile.
    @pl.when(t == 0)
    def _():
        x_all = x_ref[0]                               # (N, Dp)  — all source nodes
        rel = rel_ref[0]                               # (R, Dp)
        msg_ref[...] = (rel[:, None, :] * x_all[None, :, :]).reshape(msg_ref.shape)

    # One big-K matmul replaces R small, under-filled MXU matmuls with a serial
    # accumulator dependency.  adj is 0/1 counts — exact in bf16, upcast is exact.
    adj = adj_ref[...].astype(jnp.float32)             # (tn, R*N)
    agg = jnp.dot(adj, msg_ref[...], preferred_element_type=jnp.float32)   # (tn, Dp)
    if has_boundary:
        agg = agg + bnd_ref[0].astype(jnp.float32)

    # dst-tile slice of the layer input (self term + shortcut)
    row0 = pl.multiple_of(t * tn, tn)
    xd = x_ref[0, pl.ds(row0, tn), :]                  # (tn, Dp)

    h = (jnp.dot(xd, ws_ref[...], preferred_element_type=jnp.float32)
         + jnp.dot(agg, wa_ref[...], preferred_element_type=jnp.float32)
         + b_ref[...])

    # single-pass LayerNorm over the d_act real lanes; padded lanes of h are exactly 0,
    # so full-width sums equal real-lane sums and padded lanes stay 0 on output.
    inv_d = 1.0 / float(d_act)
    mean = jnp.sum(h, axis=-1, keepdims=True) * inv_d
    m2 = jnp.sum(h * h, axis=-1, keepdims=True) * inv_d
    var = m2 - mean * mean
    h = (h - mean) * jax.lax.rsqrt(var + LN_EPS) * g_ref[...] + beta_ref[...]
    h = jnp.maximum(h, 0.0)
    out_ref[0] = (h + xd).astype(out_ref.dtype)


def rel_conv_layer(x, rel, adj2d, boundary, w_self, w_agg, b, gamma, beta, *, d_act):
    """Pallas wrapper. x: (B, N, Dp) lane-dense padded; rel: (1 or B, R, Dp);
    adj2d: (N, R*N) bf16 pre-reshaped adjacency; boundary: (B, N, Dp) or None."""
    B, N, Dp = x.shape
    Rb, R, _ = rel.shape
    RN = adj2d.shape[1]
    assert Dp % 128 == 0 and N % 8 == 0 and adj2d.shape[0] == N and RN == R * N

    # dst-node tile: keep the double-buffered adjacency tile within ~8 MiB so the whole
    # working set stays well under v7x's 64 MiB VMEM (v5e/v6e have 128 MiB headroom).
    adj_row_bytes = RN * adj2d.dtype.itemsize
    tn = max(8, min(N, (8 * 1024 * 1024 // max(adj_row_bytes, 1)) // 8 * 8))
    while N % tn:
        tn -= 8
    # batch outer (parallel / megacore), dst-tile inner (arbitrary — msg scratch is
    # carried across it and rebuilt only at t == 0 of every batch element).
    grid = (B, N // tn)

    rel_map = (lambda bb, t: (bb, 0, 0)) if Rb == B else (lambda bb, t: (0, 0, 0))
    has_boundary = boundary is not None
    kern = functools.partial(_rel_conv_kernel, tn=tn, d_act=d_act,
                             has_boundary=has_boundary)

    in_specs = [
        pl.BlockSpec((1, N, Dp), lambda bb, t: (bb, 0, 0)),   # x: full source nodes
        pl.BlockSpec((1, R, Dp), rel_map),                    # relations (maybe shared)
        pl.BlockSpec((tn, RN), lambda bb, t: (t, 0)),         # adjacency dst-tile
    ]
    args = [x, rel, adj2d]
    if has_boundary:
        in_specs.append(pl.BlockSpec((1, tn, Dp), lambda bb, t: (bb, t, 0)))
        args.append(boundary)
    in_specs += [
        pl.BlockSpec((Dp, Dp), lambda bb, t: (0, 0)),         # w_self (grid-invariant)
        pl.BlockSpec((Dp, Dp), lambda bb, t: (0, 0)),         # w_agg
        pl.BlockSpec((1, Dp), lambda bb, t: (0, 0)),          # b
        pl.BlockSpec((1, Dp), lambda bb, t: (0, 0)),          # gamma
        pl.BlockSpec((1, Dp), lambda bb, t: (0, 0)),          # beta
    ]
    args += [w_self, w_agg, b, gamma, beta]

    return pl.pallas_call(
        kern,
        out_shape=jax.ShapeDtypeStruct((B, N, Dp), x.dtype),
        grid=grid,
        in_specs=in_specs,
        out_specs=pl.BlockSpec((1, tn, Dp), lambda bb, t: (bb, t, 0)),
        scratch_shapes=[pltpu.VMEM((RN, Dp), jnp.float32)],   # stacked DistMult messages
        compiler_params=pltpu.CompilerParams(
            dimension_semantics=("parallel", "arbitrary"),
            vmem_limit_bytes=48 * 1024 * 1024),
    )(*args)


def _mlp2_kernel(x_ref, w1_ref, b1_ref, w2_ref, b2_ref, out_ref):
    h = jnp.dot(x_ref[...], w1_ref[...], preferred_element_type=jnp.float32) + b1_ref[...]
    h = jnp.maximum(h, 0.0)
    o = jnp.dot(h, w2_ref[...], preferred_element_type=jnp.float32) + b2_ref[...]
    out_ref[...] = o.astype(out_ref.dtype)


def mlp2(x2d, w1, b1, w2, b2):
    """Fused Linear -> ReLU -> Linear, row-tiled, lane-dense padded K/H/O.
    If x2d has more columns than w1 rows, the extra columns must be zero."""
    M, Kx = x2d.shape
    Kw, H = w1.shape
    O = w2.shape[1]
    Kp = _round_up(max(Kx, Kw), 128)
    Hp = _round_up(H, 128)
    Op = _round_up(O, 128)
    tm = min(_round_up(M, 8), 256)
    Mp = _round_up(M, tm)

    xp = _pad_to(x2d, (Mp, Kp))
    w1p = _pad_to(w1, (Kp, Hp))
    b1p = _pad_to(b1.reshape(1, -1), (1, Hp))
    w2p = _pad_to(w2, (Hp, Op))
    b2p = _pad_to(b2.reshape(1, -1), (1, Op))

    out = pl.pallas_call(
        _mlp2_kernel,
        out_shape=jax.ShapeDtypeStruct((Mp, Op), x2d.dtype),
        grid=(Mp // tm,),
        in_specs=[
            pl.BlockSpec((tm, Kp), lambda i: (i, 0)),
            pl.BlockSpec((Kp, Hp), lambda i: (0, 0)),
            pl.BlockSpec((1, Hp), lambda i: (0, 0)),
            pl.BlockSpec((Hp, Op), lambda i: (0, 0)),
            pl.BlockSpec((1, Op), lambda i: (0, 0)),
        ],
        out_specs=pl.BlockSpec((tm, Op), lambda i: (i, 0)),
        compiler_params=pltpu.CompilerParams(dimension_semantics=("parallel",)),
    )(xp, w1p, b1p, w2p, b2p)
    return out[:M, :O]


# ---------------------------------------------------------------------------
# Pure-JAX references (same math, unpadded, for a sanity check)
# ---------------------------------------------------------------------------
def rel_conv_layer_ref(x, rel, adj, boundary, w_self, w_agg, b, gamma, beta, *, d_act):
    del d_act  # reference runs at the true feature dim
    msg = x[:, None, :, :] * rel[:, :, None, :]                 # (B, R, N, D)
    agg = jnp.einsum('rnm,brmd->bnd', adj, msg)
    if boundary is not None:
        agg = agg + boundary
    h = x @ w_self + agg @ w_agg + b
    mean = h.mean(-1, keepdims=True)
    var = ((h - mean) ** 2).mean(-1, keepdims=True)
    h = (h - mean) * jax.lax.rsqrt(var + LN_EPS) * gamma + beta
    return jnp.maximum(h, 0.0) + x


def mlp2_ref(x2d, w1, b1, w2, b2):
    h = jnp.maximum(x2d @ w1 + b1, 0.0)
    return h @ w2 + b2


# ---------------------------------------------------------------------------
# Parameters / glue
# ---------------------------------------------------------------------------
def init_params(key, D, num_ent_rel, num_hyper_rel, n_layers=2):
    keys = iter(jax.random.split(key, 64))

    def normal(shape, scale=0.1):
        return scale * jax.random.normal(next(keys), shape, dtype=jnp.float32)

    def zeros(shape):
        return jnp.zeros(shape, jnp.float32)

    params = {}
    # --- RelHCNet (relation model over the relation hypergraph) ---
    params['rel_emb'] = normal((num_hyper_rel, D))          # dependent=False embedding
    params['rel_layers'] = [dict(w_self=normal((D, D)), w_agg=normal((D, D)),
                                 b=zeros((1, D)),
                                 gamma=jnp.ones((1, D), jnp.float32),
                                 beta=zeros((1, D)))
                            for _ in range(n_layers)]
    params['rel_mlp'] = dict(w1=normal((D, D)), b1=zeros((1, D)),
                             w2=normal((D, D)), b2=zeros((1, D)))
    # --- EntityNBFNet ---
    params['ent_layers'] = [dict(pw1=normal((D, D)), pb1=zeros((1, D)),
                                 pw2=normal((D, D)), pb2=zeros((1, D)),
                                 w_self=normal((D, D)), w_agg=normal((D, D)),
                                 b=zeros((1, D)),
                                 gamma=jnp.ones((1, D), jnp.float32),
                                 beta=zeros((1, D)))
                            for _ in range(n_layers)]
    params['ent_mlp'] = dict(w1=normal((2 * D, 2 * D)), b1=zeros((1, 2 * D)),
                             w2=normal((2 * D, 1)), b2=zeros((1, 1)))
    return params


def dense_adjacency(src, dst, etype, num_rel, num_nodes):
    oh_r = jax.nn.one_hot(etype, num_rel, dtype=jnp.float32)
    oh_d = jax.nn.one_hot(dst, num_nodes, dtype=jnp.float32)
    oh_s = jax.nn.one_hot(src, num_nodes, dtype=jnp.float32)
    return jnp.einsum('er,ed,es->rds', oh_r, oh_d, oh_s)    # [rel, dst, src]


def motif_forward(params, data, batch, use_pallas=True):
    conv = rel_conv_layer if use_pallas else rel_conv_layer_ref
    mlp = mlp2 if use_pallas else mlp2_ref

    h_index, t_index, r_index = batch[..., 0], batch[..., 1], batch[..., 2]
    bs, num_neg = h_index.shape
    D = params['rel_emb'].shape[1]
    Dp = _round_up(D, 128) if use_pallas else D             # lane-dense feature dim
    r0 = r_index[:, 0]
    h0 = h_index[:, 0]

    def padD(a):                                            # zero-pad last axis to Dp
        return _pad_to(a, a.shape[:-1] + (Dp,))

    def pad_w(w):                                           # zero-pad (D,D) -> (Dp,Dp)
        return _pad_to(w, (Dp, Dp))

    def prep_adj(adj):                                      # [R,dst,src] -> [dst,R*src]
        if not use_pallas:
            return adj
        R, Nd, Ns = adj.shape
        return adj.transpose(1, 0, 2).reshape(Nd, R * Ns).astype(jnp.bfloat16)

    # ---------------- RelHCNet forward / inference ----------------
    Nr = data['num_ent_rel'] + 1                       # +1 padding node (torch `+ 1` shift)
    Nrp = _round_up(Nr, 8) if use_pallas else Nr
    e = data['hyper_edge_index'] + 1                   # shifted node ids
    et = data['hyper_edge_type']
    src = jnp.concatenate([e[0], e[1]])                # bidirectional arity-2 hyperedges
    dst = jnp.concatenate([e[1], e[0]])
    ety = jnp.concatenate([et, et])
    adj_rel = prep_adj(dense_adjacency(src, dst, ety, data['num_hyper_rel'], Nrp))

    q_idx = r0 + 1
    ones_feat = padD(jnp.ones((1, D), jnp.float32))    # ones in real lanes, 0 in padding
    init = jax.nn.one_hot(q_idx, Nrp, dtype=jnp.float32)[:, :, None] * ones_feat[:, None, :]
    init = init.at[:, 0, :].set(0.0)                   # init_feature[:, padding_idx, :] = 0
    rel_shared = padD(params['rel_emb'])[None]         # (1, R_hyper, Dp) — no batch bcast

    x = init
    for lp in params['rel_layers']:
        x = conv(x, rel_shared, adj_rel, None,
                 pad_w(lp['w_self']), pad_w(lp['w_agg']),
                 padD(lp['b']), padD(lp['gamma']), padD(lp['beta']), d_act=D)
    m = params['rel_mlp']
    x = mlp(x.reshape(bs * Nrp, x.shape[-1]), m['w1'], m['b1'], m['w2'], m['b2'])
    x = padD(x).reshape(bs, Nrp, Dp)
    relation_representations = x[:, 1:1 + data['num_ent_rel'], :]    # (bs, Re, Dp)

    # ---------------- EntityNBFNet bellman-ford ----------------
    N = data['num_ent_nodes']
    Np = _round_up(N, 8) if use_pallas else N
    Re = data['num_ent_rel']
    adj_ent = prep_adj(dense_adjacency(data['ent_edge_src'], data['ent_edge_dst'],
                                       data['ent_edge_type'], Re, Np))

    query = relation_representations[jnp.arange(bs), r0]             # (bs, Dp)
    boundary = jax.nn.one_hot(h0, Np, dtype=jnp.float32)[:, :, None] * query[:, None, :]

    x = boundary
    for lp in params['ent_layers']:
        # project_relations=True: per-layer MLP on the relation representations
        proj = mlp(relation_representations.reshape(bs * Re, relation_representations.shape[-1]),
                   lp['pw1'], lp['pb1'], lp['pw2'], lp['pb2'])
        proj = padD(proj).reshape(bs, Re, Dp)
        x = conv(x, proj, adj_ent, boundary,
                 pad_w(lp['w_self']), pad_w(lp['w_agg']),
                 padD(lp['b']), padD(lp['gamma']), padD(lp['beta']), d_act=D)

    # gather tail-node features, concat with query -> compact (unpadded) 2D feature
    idx = jnp.broadcast_to(t_index[:, :, None], (bs, num_neg, x.shape[-1]))
    x_t = jnp.take_along_axis(x, idx, axis=1)[..., :D]               # (bs, num_neg, D)
    q_t = jnp.broadcast_to(query[:, None, :D], (bs, num_neg, D))
    feature = jnp.concatenate([x_t, q_t], axis=-1)                   # (bs, num_neg, 2D)
    m = params['ent_mlp']
    score = mlp(feature.reshape(bs * num_neg, 2 * D), m['w1'], m['b1'], m['w2'], m['b2'])
    return score.reshape(bs, num_neg)


# ---------------------------------------------------------------------------
if __name__ == "__main__":
    key = jax.random.PRNGKey(0)
    k_param, k_graph, k_batch = jax.random.split(key, 3)

    D = 32          # hidden / input dim (shared by relation & entity models)
    N = 16          # entity nodes
    Re = 4          # entity-graph relation types == relation-hypergraph nodes
    NUM_HYPER_REL = 7
    E_ent, E_hyp = 24, 8
    bs, num_neg = 2, 3

    params = init_params(k_param, D, Re, NUM_HYPER_REL)

    kg = jax.random.split(k_graph, 5)
    data = dict(
        num_ent_nodes=N,
        num_ent_rel=Re,
        num_hyper_rel=NUM_HYPER_REL,
        ent_edge_src=jax.random.randint(kg[0], (E_ent,), 0, N),
        ent_edge_dst=jax.random.randint(kg[1], (E_ent,), 0, N),
        ent_edge_type=jax.random.randint(kg[2], (E_ent,), 0, Re),
        hyper_edge_index=jax.random.randint(kg[3], (2, E_hyp), 0, Re),
        hyper_edge_type=jax.random.randint(kg[4], (E_hyp,), 0, NUM_HYPER_REL),
    )

    kb = jax.random.split(k_batch, 3)
    h0 = jax.random.randint(kb[0], (bs,), 0, N)
    r0 = jax.random.randint(kb[1], (bs,), 0, Re)
    t_index = jax.random.randint(kb[2], (bs, num_neg), 0, N)
    h_index = jnp.broadcast_to(h0[:, None], (bs, num_neg))   # constant per row (as asserted)
    r_index = jnp.broadcast_to(r0[:, None], (bs, num_neg))
    batch = jnp.stack([h_index, t_index, r_index], axis=-1)  # (bs, num_neg, 3)

    score = jax.block_until_ready(motif_forward(params, data, batch, use_pallas=True))
    score_ref = jax.block_until_ready(motif_forward(params, data, batch, use_pallas=False))

    assert score.shape == (bs, num_neg)
    assert bool(jnp.all(jnp.isfinite(score)))
    assert jnp.allclose(score, score_ref, rtol=1e-3, atol=1e-3), (score, score_ref)
    print("KERNEL_OK")
</pallas_src>

<mosaic_0001>
module attributes {stable_mosaic.version = 11 : i64} {
  func.func @_rel_conv_kernel(%arg0: i32, %arg1: i32, %arg2: memref<1x8x128xf32, #tpu.memory_space<vmem>>, %arg3: memref<1x7x128xf32, #tpu.memory_space<vmem>>, %arg4: memref<8x56xbf16, #tpu.memory_space<vmem>>, %arg5: memref<128x128xf32, #tpu.memory_space<vmem>>, %arg6: memref<128x128xf32, #tpu.memory_space<vmem>>, %arg7: memref<1x128xf32, #tpu.memory_space<vmem>>, %arg8: memref<1x128xf32, #tpu.memory_space<vmem>>, %arg9: memref<1x128xf32, #tpu.memory_space<vmem>>, %arg10: memref<1x8x128xf32, #tpu.memory_space<vmem>>, %arg11: memref<56x128xf32, #tpu.memory_space<vmem>>) attributes {dimension_semantics = [#tpu.dimension_semantics<parallel>, #tpu.dimension_semantics<arbitrary>], iteration_bounds = array<i64: 2, 1>, scalar_prefetch = 0 : i64, scratch_operands = 1 : i64, tpu.core_type = #tpu.core_type<tc>, window_params = [{transform_indices = @transform_0, window_bounds = array<i64: 1, 8, 128>}, {pipeline_mode = #tpu.pipeline_mode<synchronous>, transform_indices = @transform_1, window_bounds = array<i64: 1, 7, 128>}, {transform_indices = @transform_2, window_bounds = array<i64: 8, 56>}, {pipeline_mode = #tpu.pipeline_mode<synchronous>, transform_indices = @transform_3, window_bounds = array<i64: 128, 128>}, {pipeline_mode = #tpu.pipeline_mode<synchronous>, transform_indices = @transform_4, window_bounds = array<i64: 128, 128>}, {pipeline_mode = #tpu.pipeline_mode<synchronous>, transform_indices = @transform_5, window_bounds = array<i64: 1, 128>}, {pipeline_mode = #tpu.pipeline_mode<synchronous>, transform_indices = @transform_6, window_bounds = array<i64: 1, 128>}, {pipeline_mode = #tpu.pipeline_mode<synchronous>, transform_indices = @transform_7, window_bounds = array<i64: 1, 128>}, {transform_indices = @transform_8, window_bounds = array<i64: 1, 8, 128>}]} {
    %c0_i32 = arith.constant 0 : i32
    %0 = arith.cmpi eq, %arg1, %c0_i32 : i32
    %1 = arith.extui %0 : i1 to i32
    %c0_i32_0 = arith.constant 0 : i32
    %2 = arith.cmpi ne, %1, %c0_i32_0 : i32
    scf.if %2 {
      %c0_27 = arith.constant 0 : index
      %c0_28 = arith.constant 0 : index
      %c0_29 = arith.constant 0 : index
      %50 = vector.load %arg2[%c0_27, %c0_28, %c0_29] : memref<1x8x128xf32, #tpu.memory_space<vmem>>, vector<1x8x128xf32>
      %51 = vector.shape_cast %50 : vector<1x8x128xf32> to vector<8x128xf32>
      %c0_30 = arith.constant 0 : index
      %c0_31 = arith.constant 0 : index
      %c0_32 = arith.constant 0 : index
      %52 = vector.load %arg3[%c0_30, %c0_31, %c0_32] : memref<1x7x128xf32, #tpu.memory_space<vmem>>, vector<1x7x128xf32>
      %53 = vector.shape_cast %52 : vector<1x7x128xf32> to vector<7x128xf32>
      %54 = vector.shape_cast %53 : vector<7x128xf32> to vector<7x1x128xf32>
      %55 = vector.shape_cast %51 : vector<8x128xf32> to vector<1x8x128xf32>
      %56 = vector.broadcast %54 : vector<7x1x128xf32> to vector<7x8x128xf32>
      %57 = vector.broadcast %55 : vector<1x8x128xf32> to vector<7x8x128xf32>
      %58 = arith.mulf %56, %57 : vector<7x8x128xf32>
      %59 = vector.shape_cast %58 : vector<7x8x128xf32> to vector<56x128xf32>
      %c0_33 = arith.constant 0 : index
      %c0_34 = arith.constant 0 : index
      %60 = vector.load %arg11[%c0_33, %c0_34] : memref<56x128xf32, #tpu.memory_space<vmem>>, vector<56x128xf32>
      tpu.vector_store %arg11[%c0_33, %c0_34], %59 {strides = array<i32>} : memref<56x128xf32, #tpu.memory_space<vmem>>, vector<56x128xf32>,
    } else {
    }
    %c0 = arith.constant 0 : index
    %c0_1 = arith.constant 0 : index
    %3 = vector.load %arg4[%c0, %c0_1] : memref<8x56xbf16, #tpu.memory_space<vmem>>, vector<8x56xbf16>
    %4 = arith.extf %3 : vector<8x56xbf16> to vector<8x56xf32>
    %c0_2 = arith.constant 0 : index
    %c0_3 = arith.constant 0 : index
    %5 = vector.load %arg11[%c0_2, %c0_3] : memref<56x128xf32, #tpu.memory_space<vmem>>, vector<56x128xf32>
    %cst = arith.constant dense<0.000000e+00> : vector<8x128xf32>
    %6 = tpu.matmul %4, %5, %cst {dimension_numbers = #tpu.dot_dimension_numbers<[1], [0], [0], [1], [0, 0, 1, 1], [], []>} : vector<8x56xf32>, vector<56x128xf32>, vector<8x128xf32> -> vector<8x128xf32>
    %c8_i32 = arith.constant 8 : i32
    %7 = arith.muli %arg1, %c8_i32 : i32
    %8 = tpu.assume_multiple %7, 8 : i32
    %c0_4 = arith.constant 0 : index
    %9 = arith.index_cast %8 : i32 to index
    %c0_5 = arith.constant 0 : index
    %10 = vector.load %arg2[%c0_4, %9, %c0_5] : memref<1x8x128xf32, #tpu.memory_space<vmem>>, vector<1x8x128xf32>
    %11 = vector.shape_cast %10 : vector<1x8x128xf32> to vector<8x128xf32>
    %c0_6 = arith.constant 0 : index
    %c0_7 = arith.constant 0 : index
    %12 = vector.load %arg5[%c0_6, %c0_7] : memref<128x128xf32, #tpu.memory_space<vmem>>, vector<128x128xf32>
    %cst_8 = arith.constant dense<0.000000e+00> : vector<8x128xf32>
    %13 = tpu.matmul %11, %12, %cst_8 {dimension_numbers = #tpu.dot_dimension_numbers<[1], [0], [0], [1], [0, 0, 1, 1], [], []>} : vector<8x128xf32>, vector<128x128xf32>, vector<8x128xf32> -> vector<8x128xf32>
    %c0_9 = arith.constant 0 : index
    %c0_10 = arith.constant 0 : index
    %14 = vector.load %arg6[%c0_9, %c0_10] : memref<128x128xf32, #tpu.memory_space<vmem>>, vector<128x128xf32>
    %cst_11 = arith.constant dense<0.000000e+00> : vector<8x128xf32>
    %15 = tpu.matmul %6, %14, %cst_11 {dimension_numbers = #tpu.dot_dimension_numbers<[1], [0], [0], [1], [0, 0, 1, 1], [], []>} : vector<8x128xf32>, vector<128x128xf32>, vector<8x128xf32> -> vector<8x128xf32>
    %16 = arith.addf %13, %15 : vector<8x128xf32>
    %c0_12 = arith.constant 0 : index
    %c0_13 = arith.constant 0 : index
    %17 = vector.load %arg7[%c0_12, %c0_13] : memref<1x128xf32, #tpu.memory_space<vmem>>, vector<1x128xf32>
    %18 = vector.broadcast %17 : vector<1x128xf32> to vector<8x128xf32>
    %19 = arith.addf %16, %18 : vector<8x128xf32>
    %cst_14 = arith.constant dense<0.000000e+00> : vector<8xf32>
    %20 = vector.multi_reduction <add>, %19, %cst_14 [1] : vector<8x128xf32> to vector<8xf32>
    %21 = vector.shape_cast %20 : vector<8xf32> to vector<8x1xf32>
    %cst_15 = arith.constant 3.125000e-02 : f32
    %22 = vector.broadcast %cst_15 : f32 to vector<8x1xf32>
    %23 = arith.mulf %21, %22 : vector<8x1xf32>
    %24 = arith.mulf %19, %19 : vector<8x128xf32>
    %cst_16 = arith.constant dense<0.000000e+00> : vector<8xf32>
    %25 = vector.multi_reduction <add>, %24, %cst_16 [1] : vector<8x128xf32> to vector<8xf32>
    %26 = vector.shape_cast %25 : vector<8xf32> to vector<8x1xf32>
    %cst_17 = arith.constant 3.125000e-02 : f32
    %27 = vector.broadcast %cst_17 : f32 to vector<8x1xf32>
    %28 = arith.mulf %26, %27 : vector<8x1xf32>
    %29 = arith.mulf %23, %23 : vector<8x1xf32>
    %30 = arith.subf %28, %29 : vector<8x1xf32>
    %31 = vector.broadcast %23 : vector<8x1xf32> to vector<8x128xf32>
    %32 = arith.subf %19, %31 : vector<8x128xf32>
    %cst_18 = arith.constant 9.99999974E-6 : f32
    %33 = vector.broadcast %cst_18 : f32 to vector<8x1xf32>
    %34 = arith.addf %30, %33 : vector<8x1xf32>
    %35 = math.rsqrt %34 : vector<8x1xf32>
    %36 = vector.broadcast %35 : vector<8x1xf32> to vector<8x128xf32>
    %37 = arith.mulf %32, %36 : vector<8x128xf32>
    %c0_19 = arith.constant 0 : index
    %c0_20 = arith.constant 0 : index
    %38 = vector.load %arg8[%c0_19, %c0_20] : memref<1x128xf32, #tpu.memory_space<vmem>>, vector<1x128xf32>
    %39 = vector.broadcast %38 : vector<1x128xf32> to vector<8x128xf32>
    %40 = arith.mulf %37, %39 : vector<8x128xf32>
    %c0_21 = arith.constant 0 : index
    %c0_22 = arith.constant 0 : index
    %41 = vector.load %arg9[%c0_21, %c0_22] : memref<1x128xf32, #tpu.memory_space<vmem>>, vector<1x128xf32>
    %42 = vector.broadcast %41 : vector<1x128xf32> to vector<8x128xf32>
    %43 = arith.addf %40, %42 : vector<8x128xf32>
    %cst_23 = arith.constant 0.000000e+00 : f32
    %44 = vector.broadcast %cst_23 : f32 to vector<8x128xf32>
    %45 = arith.maximumf %43, %44 : vector<8x128xf32>
    %46 = arith.addf %45, %11 : vector<8x128xf32>
    %c0_24 = arith.constant 0 : index
    %c0_25 = arith.constant 0 : index
    %c0_26 = arith.constant 0 : index
    %47 = vector.load %arg10[%c0_24, %c0_25, %c0_26] : memref<1x8x128xf32, #tpu.memory_space<vmem>>, vector<1x8x128xf32>
    %48 = vector.shape_cast %47 : vector<1x8x128xf32> to vector<8x128xf32>
    %49 = vector.shape_cast %46 : vector<8x128xf32> to vector<1x8x128xf32>
    tpu.vector_store %arg10[%c0_24, %c0_25, %c0_26], %49 {strides = array<i32>} : memref<1x8x128xf32, #tpu.memory_space<vmem>>, vector<1x8x128xf32>,
    return
  }
  func.func @transform_0(%arg0: i32, %arg1: i32) -> (i32, i32, i32) {
    %c0_i32 = arith.constant 0 : i32
    %c0_i32_0 = arith.constant 0 : i32
    %c0_i32_1 = arith.constant 0 : i32
    return %arg0, %c0_i32, %c0_i32_0 : i32, i32, i32
  }
  func.func @transform_1(%arg0: i32, %arg1: i32) -> (i32, i32, i32) {
    %c0_i32 = arith.constant 0 : i32
    %c0_i32_0 = arith.constant 0 : i32
    %c0_i32_1 = arith.constant 0 : i32
    %c0_i32_2 = arith.constant 0 : i32
    return %c0_i32, %c0_i32_0, %c0_i32_1 : i32, i32, i32
  }
  func.func @transform_2(%arg0: i32, %arg1: i32) -> (i32, i32) {
    %c0_i32 = arith.constant 0 : i32
    %c0_i32_0 = arith.constant 0 : i32
    return %arg1, %c0_i32 : i32, i32
  }
  func.func @transform_3(%arg0: i32, %arg1: i32) -> (i32, i32) {
    %c0_i32 = arith.constant 0 : i32
    %c0_i32_0 = arith.constant 0 : i32
    %c0_i32_1 = arith.constant 0 : i32
    return %c0_i32, %c0_i32_0 : i32, i32
  }
  func.func @transform_4(%arg0: i32, %arg1: i32) -> (i32, i32) {
    %c0_i32 = arith.constant 0 : i32
    %c0_i32_0 = arith.constant 0 : i32
    %c0_i32_1 = arith.constant 0 : i32
    return %c0_i32, %c0_i32_0 : i32, i32
  }
  func.func @transform_5(%arg0: i32, %arg1: i32) -> (i32, i32) {
    %c0_i32 = arith.constant 0 : i32
    %c0_i32_0 = arith.constant 0 : i32
    %c0_i32_1 = arith.constant 0 : i32
    return %c0_i32, %c0_i32_0 : i32, i32
  }
  func.func @transform_6(%arg0: i32, %arg1: i32) -> (i32, i32) {
    %c0_i32 = arith.constant 0 : i32
    %c0_i32_0 = arith.constant 0 : i32
    %c0_i32_1 = arith.constant 0 : i32
    return %c0_i32, %c0_i32_0 : i32, i32
  }
  func.func @transform_7(%arg0: i32, %arg1: i32) -> (i32, i32) {
    %c0_i32 = arith.constant 0 : i32
    %c0_i32_0 = arith.constant 0 : i32
    %c0_i32_1 = arith.constant 0 : i32
    return %c0_i32, %c0_i32_0 : i32, i32
  }
  func.func @transform_8(%arg0: i32, %arg1: i32) -> (i32, i32, i32) {
    %c0_i32 = arith.constant 0 : i32
    %c0_i32_0 = arith.constant 0 : i32
    return %arg0, %arg1, %c0_i32 : i32, i32, i32
  }
}

</mosaic_0001>

<llo_original>
// kernel: tpu_custom_call.1
$region0: #{tpu_custom_call.1}
  #allocation0 [shape = 'u32[]', space=smem, size = 0x4, offset = 0x4, fixed_abs, tag = 'smem constant byte address 0x4 - core index']
  #allocation1 [shape = 'u32[144,128]{1,0:T(1,128)}', space=vmem, size = 0x12000, scoped, tag = 'internal scratch']
  #allocation2 [shape = 'f32[56,128]{1,0:T(8,128)}', space=vmem, size = 0x7000, scoped, tag = 'scratch operand']
  %s0 = inlined_call_operand.hbm [shape: f32[2,8,128], index: 0, kind: input, shape index: {}]
  %s1 = inlined_call_operand.vmem [shape: f32[1,7,128], index: 1, kind: input, shape index: {}]
  %s2 = inlined_call_operand.vmem [shape: bf16[8,56], index: 2, kind: input, shape index: {}]
  %s3 = inlined_call_operand.hbm [shape: f32[128,128], index: 3, kind: input, shape index: {}]
  %s4 = inlined_call_operand.hbm [shape: f32[128,128], index: 4, kind: input, shape index: {}]
  %s5 = inlined_call_operand.vmem [shape: f32[1,128], index: 5, kind: input, shape index: {}]
  %s6 = inlined_call_operand.vmem [shape: f32[1,128], index: 6, kind: input, shape index: {}]
  %s7 = inlined_call_operand.vmem [shape: f32[1,128], index: 7, kind: input, shape index: {}]
  %s8 = inlined_call_operand.hbm [shape: f32[2,8,128], index: 8, kind: output, shape index: {}]
  %s9 = sld [smem:[#allocation0]]
  $region81: #{tpu_custom_call.1} parent=0
    _
  %s11 = ssub.s32 1, %s9
  %s12 = scalar_select 0, %s11, %s9
  $region1: #{tpu_custom_call.1} parent=0
    #allocation3 [shape = 'u8[8192]{0}', space=vmem, size = 0x2000, scoped, tag = 'input window, operand 0']
    #allocation4 [shape = 's32[2]{0}', space=sflag, size = 0x8, scoped, tag = 'scoped memory for tpu_custom_call.1']
    #allocation5 [shape = 's32[2]{0}', space=sflag, size = 0x8, scoped, tag = 'scoped memory for tpu_custom_call.1']
    #allocation6 [shape = 'u8[65536]{0}', space=vmem, size = 0x10000, scoped, tag = 'input window, operand 3, single buffered']
    #allocation7 [shape = 's32[1]{0}', space=sflag, size = 0x4, scoped, tag = 'scoped memory for tpu_custom_call.1']
    #allocation8 [shape = 'u8[65536]{0}', space=vmem, size = 0x10000, scoped, tag = 'input window, operand 4, single buffered']
    #allocation9 [shape = 'u8[8192]{0}', space=vmem, size = 0x2000, scoped, tag = 'output window, operand 0']
    %13 = vsyncpa [#allocation4], 0
    %s14 = scalar_lea.sflag [#allocation4], 1
    %15 = vsyncpa %s14, 0
    %16 = vsyncpa [#allocation7], 0
    %17 = vsyncpa [#allocation5], 0
    %s18 = scalar_lea.sflag [#allocation5], 1
    %19 = vsyncpa %s18, 0
    loop: start=0, step=1, limit=4
    $region2: #{tpu_custom_call.1} parent=1 // loop_pre_header
      _
    $region3: #{tpu_custom_call.1} parent=1 // loop_header
      %s21 = sphi 0, %s25
      %p22 = scmp.ge.s32.totalorder %s21, 4
      %s28 = sphi 0, %s40
      %s29 = sphi 0, %s36
      %s30 = sphi 0, %s28
      %s31 = sphi 0, %s29
      %s32 = sphi 0, %s30
      %s33 = sphi 0, %s31
      %s43 = sphi 0, %s45
      %s46 = sphi 0, %s43
      %s47 = sphi 0, %s46
      %s63 = sphi 0, %s47
      %s67 = sphi 0, %s67
      %s69 = sphi 0, %s67
      %s70 = sphi 0, %s69
      %s84 = sphi 0, %s70
      %s90 = sphi 0, %s92
      %s93 = sphi 0, %s90
      %s94 = sphi 0, %s93
      %s110 = sphi 0, %s94
      %s114 = sphi 0, %s114
      %s116 = sphi 0, %s114
      %s117 = sphi 0, %s116
      %s131 = sphi 0, %s117
      %s135 = sphi 0, %s135
      %s137 = sphi 0, %s135
      %s138 = sphi 0, %s137
      %s152 = sphi 0, %s138
      %s156 = sphi 0, %s156
      %s158 = sphi 0, %s156
      %s159 = sphi 0, %s158
      %s173 = sphi 0, %s159
      %s177 = sphi 0, %s177
      %s179 = sphi 0, %s177
      %s180 = sphi 0, %s179
      %s194 = sphi 0, %s180
      %s198 = sphi 0, %s198
      %s200 = sphi 0, %s198
      %s201 = sphi 0, %s200
      %s215 = sphi 0, %s201
      %s223 = sphi 0, %s225
      %s226 = sphi 0, %s223
      %s227 = sphi 0, %s226
      %s243 = sphi 0, %s227
    $region4: #{tpu_custom_call.1} parent=1 // loop_header_branch
      %24 = sbr.rel (%p22) target = $region8
    $region5: #{tpu_custom_call.1} parent=1 // loop_body
      %s26 = ssub.s32 %s21, 1
      %s27 = ssub.s32 %s21, 2
      %s34 = sadd.s32 1, %s29
      %p35 = scmp.ge.s32.totalorder %s34, 1
      %s36 = scalar_select %p35, 0, %s34
      %s37 = sadd.s32 1, %s28
      %s38 = scalar_select %p35, %s37, %s28
      %p39 = scmp.ge.s32.totalorder %s38, 2
      %s40 = scalar_select %p39, 0, %s38
      %s41 = ssub.s32 %s28, %s40
      %p42 = scmp.eq.s32.totalorder %s41, 0
      %s44 = sadd.s32 %s43, 1
      %s45 = scalar_select %p42, %s43, %s44
      %p48 = pneg %p42
      %p49 = scmp.eq.s32.totalorder %s21, 1
      %p50 = por %p48, %p49
      %p51 = scmp.ne.s32.totalorder %s43, %s46
      %p52 = scmp.eq.s32.totalorder %s21, 0
      %p53 = por %p51, %p52
      %p54 = scmp.ne.s32.totalorder %s43, %s46
      %p55 = scmp.eq.s32.totalorder %s26, 1
      %p56 = por %p54, %p55
      %p57 = scmp.ne.s32.totalorder %s46, %s47
      %p58 = scmp.eq.s32.totalorder %s26, 0
      %p59 = por %p57, %p58
      %p60 = scmp.ne.s32.totalorder %s46, %s47
      %p61 = scmp.eq.s32.totalorder %s27, 1
      %p62 = por %p60, %p61
      %p64 = scmp.ne.s32.totalorder %s47, %s63
      %p65 = scmp.eq.s32.totalorder %s27, 0
      %p66 = por %p64, %p65
      %s68 = sadd.s32 %s67, 1
      %p71 = scmp.eq.s32.totalorder %s21, 1
      %p72 = scmp.ne.s32.totalorder %s67, %s69
      %p73 = scmp.eq.s32.totalorder %s21, 0
      %p74 = por %p72, %p73
      %p75 = scmp.ne.s32.totalorder %s67, %s69
      %p76 = scmp.eq.s32.totalorder %s26, 1
      %p77 = por %p75, %p76
      %p78 = scmp.ne.s32.totalorder %s69, %s70
      %p79 = scmp.eq.s32.totalorder %s26, 0
      %p80 = por %p78, %p79
      %p81 = scmp.ne.s32.totalorder %s69, %s70
      %p82 = scmp.eq.s32.totalorder %s27, 1
      %p83 = por %p81, %p82
      %p85 = scmp.ne.s32.totalorder %s70, %s84
      %p86 = scmp.eq.s32.totalorder %s27, 0
      %p87 = por %p85, %p86
      %s88 = ssub.s32 %s29, %s36
      %p89 = scmp.eq.s32.totalorder %s88, 0
      %s91 = sadd.s32 %s90, 1
      %s92 = scalar_select %p89, %s90, %s91
      %p95 = pneg %p89
      %p96 = scmp.eq.s32.totalorder %s21, 1
      %p97 = por %p95, %p96
      %p98 = scmp.ne.s32.totalorder %s90, %s93
      %p99 = scmp.eq.s32.totalorder %s21, 0
      %p100 = por %p98, %p99
      %p101 = scmp.ne.s32.totalorder %s90, %s93
      %p102 = scmp.eq.s32.totalorder %s26, 1
      %p103 = por %p101, %p102
      %p104 = scmp.ne.s32.totalorder %s93, %s94
      %p105 = scmp.eq.s32.totalorder %s26, 0
      %p106 = por %p104, %p105
      %p107 = scmp.ne.s32.totalorder %s93, %s94
      %p108 = scmp.eq.s32.totalorder %s27, 1
      %p109 = por %p107, %p108
      %p111 = scmp.ne.s32.totalorder %s94, %s110
      %p112 = scmp.eq.s32.totalorder %s27, 0
      %p113 = por %p111, %p112
      %s115 = sadd.s32 %s114, 1
      %p118 = scmp.eq.s32.totalorder %s21, 1
      %p119 = scmp.ne.s32.totalorder %s114, %s116
      %p120 = scmp.eq.s32.totalorder %s21, 0
      %p121 = por %p119, %p120
      %p122 = scmp.ne.s32.totalorder %s114, %s116
      %p123 = scmp.eq.s32.totalorder %s26, 1
      %p124 = por %p122, %p123
      %p125 = scmp.ne.s32.totalorder %s116, %s117
      %p126 = scmp.eq.s32.totalorder %s26, 0
      %p127 = por %p125, %p126
      %p128 = scmp.ne.s32.totalorder %s116, %s117
      %p129 = scmp.eq.s32.totalorder %s27, 1
      %p130 = por %p128, %p129
      %p132 = scmp.ne.s32.totalorder %s117, %s131
      %p133 = scmp.eq.s32.totalorder %s27, 0
      %p134 = por %p132, %p133
      %s136 = sadd.s32 %s135, 1
      %p139 = scmp.eq.s32.totalorder %s21, 1
      %p140 = scmp.ne.s32.totalorder %s135, %s137
      %p141 = scmp.eq.s32.totalorder %s21, 0
      %p142 = por %p140, %p141
      %p143 = scmp.ne.s32.totalorder %s135, %s137
      %p144 = scmp.eq.s32.totalorder %s26, 1
      %p145 = por %p143, %p144
      %p146 = scmp.ne.s32.totalorder %s137, %s138
      %p147 = scmp.eq.s32.totalorder %s26, 0
      %p148 = por %p146, %p147
      %p149 = scmp.ne.s32.totalorder %s137, %s138
      %p150 = scmp.eq.s32.totalorder %s27, 1
      %p151 = por %p149, %p150
      %p153 = scmp.ne.s32.totalorder %s138, %s152
      %p154 = scmp.eq.s32.totalorder %s27, 0
      %p155 = por %p153, %p154
      %s157 = sadd.s32 %s156, 1
      %p160 = scmp.eq.s32.totalorder %s21, 1
      %p161 = scmp.ne.s32.totalorder %s156, %s158
      %p162 = scmp.eq.s32.totalorder %s21, 0
      %p163 = por %p161, %p162
      %p164 = scmp.ne.s32.totalorder %s156, %s158
      %p165 = scmp.eq.s32.totalorder %s26, 1
      %p166 = por %p164, %p165
      %p167 = scmp.ne.s32.totalorder %s158, %s159
      %p168 = scmp.eq.s32.totalorder %s26, 0
      %p169 = por %p167, %p168
      %p170 = scmp.ne.s32.totalorder %s158, %s159
      %p171 = scmp.eq.s32.totalorder %s27, 1
      %p172 = por %p170, %p171
      %p174 = scmp.ne.s32.totalorder %s159, %s173
      %p175 = scmp.eq.s32.totalorder %s27, 0
      %p176 = por %p174, %p175
      %s178 = sadd.s32 %s177, 1
      %p181 = scmp.eq.s32.totalorder %s21, 1
      %p182 = scmp.ne.s32.totalorder %s177, %s179
      %p183 = scmp.eq.s32.totalorder %s21, 0
      %p184 = por %p182, %p183
      %p185 = scmp.ne.s32.totalorder %s177, %s179
      %p186 = scmp.eq.s32.totalorder %s26, 1
      %p187 = por %p185, %p186
      %p188 = scmp.ne.s32.totalorder %s179, %s180
      %p189 = scmp.eq.s32.totalorder %s26, 0
      %p190 = por %p188, %p189
      %p191 = scmp.ne.s32.totalorder %s179, %s180
      %p192 = scmp.eq.s32.totalorder %s27, 1
      %p193 = por %p191, %p192
      %p195 = scmp.ne.s32.totalorder %s180, %s194
      %p196 = scmp.eq.s32.totalorder %s27, 0
      %p197 = por %p195, %p196
      %s199 = sadd.s32 %s198, 1
      %p202 = scmp.eq.s32.totalorder %s21, 1
      %p203 = scmp.ne.s32.totalorder %s198, %s200
      %p204 = scmp.eq.s32.totalorder %s21, 0
      %p205 = por %p203, %p204
      %p206 = scmp.ne.s32.totalorder %s198, %s200
      %p207 = scmp.eq.s32.totalorder %s26, 1
      %p208 = por %p206, %p207
      %p209 = scmp.ne.s32.totalorder %s200, %s201
      %p210 = scmp.eq.s32.totalorder %s26, 0
      %p211 = por %p209, %p210
      %p212 = scmp.ne.s32.totalorder %s200, %s201
      %p213 = scmp.eq.s32.totalorder %s27, 1
      %p214 = por %p212, %p213
      %p216 = scmp.ne.s32.totalorder %s201, %s215
      %p217 = scmp.eq.s32.totalorder %s27, 0
      %p218 = por %p216, %p217
      %s219 = ssub.s32 %s28, %s40
      %s220 = ssub.s32 %s29, %s36
      %s221 = sor.u32 %s219, %s220
      %p222 = scmp.eq.s32.totalorder %s221, 0
      %s224 = sadd.s32 %s223, 1
      %s225 = scalar_select %p222, %s223, %s224
      %p228 = pneg %p222
      %p229 = scmp.eq.s32.totalorder %s21, 1
      %p230 = por %p228, %p229
      %p231 = scmp.ne.s32.totalorder %s223, %s226
      %p232 = scmp.eq.s32.totalorder %s21, 0
      %p233 = por %p231, %p232
      %p234 = scmp.ne.s32.totalorder %s223, %s226
      %p235 = scmp.eq.s32.totalorder %s26, 1
      %p236 = por %p234, %p235
      %p237 = scmp.ne.s32.totalorder %s226, %s227
      %p238 = scmp.eq.s32.totalorder %s26, 0
      %p239 = por %p237, %p238
      %p240 = scmp.ne.s32.totalorder %s226, %s227
      %p241 = scmp.eq.s32.totalorder %s27, 1
      %p242 = por %p240, %p241
      %p244 = scmp.ne.s32.totalorder %s227, %s243
      %p245 = scmp.eq.s32.totalorder %s27, 0
      %p246 = por %p244, %p245
      %p247 = scmp.le.s32.totalorder 1, %s21
      %p248 = scmp.lt.s32.totalorder %s21, 3
      %p249 = pnand %p247, %p248
      %p250 = pneg %p249
      // Predicated region
      $region9: #{tpu_custom_call.1} parent=5 // pred_check
        _
      $region10: #{tpu_custom_call.1} parent=5 // pred_check_branch
        %252 = sbr.rel (%p249) target = $region12
      $region11: #{tpu_custom_call.1} parent=5 // pred_region
        %s253 = ssub.s32 %s21, 1
        // Predicated region
        $region13: #{tpu_custom_call.1} parent=11 // pred_check
          %p254 = pneg %p80
        $region14: #{tpu_custom_call.1} parent=11 // pred_check_branch
          %256 = sbr.rel (%p254) target = $region16
        $region15: #{tpu_custom_call.1} parent=11 // pred_region
          _
        $region16: #{tpu_custom_call.1} parent=11 // pred_fallthru
          _
        // Predicated region
        $region17: #{tpu_custom_call.1} parent=11 // pred_check
          %p257 = pneg %p106
        $region18: #{tpu_custom_call.1} parent=11 // pred_check_branch
          %259 = sbr.rel (%p257) target = $region20
        $region19: #{tpu_custom_call.1} parent=11 // pred_region
          %p260 = scmp.lt.s32.totalorder %s31, 0
          %s261 = scalar_select %p260, %s31, 0
          %s262 = smul.addr %s261, 4
          %s263 = scalar_lea.vmem %s2, %s262
        $region20: #{tpu_custom_call.1} parent=11 // pred_fallthru
          _
        // Predicated region
        $region21: #{tpu_custom_call.1} parent=11 // pred_check
          %p264 = pneg %p127
        $region22: #{tpu_custom_call.1} parent=11 // pred_check_branch
          %266 = sbr.rel (%p264) target = $region24
        $region23: #{tpu_custom_call.1} parent=11 // pred_region
          %s268 = ssub.s32 2048, 2048
          %269 = vsyncadd [#allocation7], %s268
          %s270 = sshll.u32 [#allocation6], 4
          %s271 = int_to_ptr.vmem [resolvable:$true] %s270
          %276 = dma.hbm_to_vmem [thread:$0]  %s3, 2048, %s271, [#allocation7], 128, 128, 8
        $region24: #{tpu_custom_call.1} parent=11 // pred_fallthru
          _
        // Predicated region
        $region25: #{tpu_custom_call.1} parent=11 // pred_check
          %p277 = pneg %p148
        $region26: #{tpu_custom_call.1} parent=11 // pred_check_branch
          %279 = sbr.rel (%p277) target = $region28
        $region27: #{tpu_custom_call.1} parent=11 // pred_region
          %s281 = ssub.s32 2048, 2048
          %282 = vsyncadd [#allocation7], %s281
          %s283 = sshll.u32 [#allocation8], 4
          %s284 = int_to_ptr.vmem [resolvable:$true] %s283
          %289 = dma.hbm_to_vmem [thread:$0]  %s4, 2048, %s284, [#allocation7], 128, 128, 8
        $region28: #{tpu_custom_call.1} parent=11 // pred_fallthru
          _
        // Predicated region
        $region29: #{tpu_custom_call.1} parent=11 // pred_check
          %p290 = pneg %p169
        $region30: #{tpu_custom_call.1} parent=11 // pred_check_branch
          %292 = sbr.rel (%p290) target = $region32
        $region31: #{tpu_custom_call.1} parent=11 // pred_region
          _
        $region32: #{tpu_custom_call.1} parent=11 // pred_fallthru
          _
        // Predicated region
        $region33: #{tpu_custom_call.1} parent=11 // pred_check
          %p293 = pneg %p190
        $region34: #{tpu_custom_call.1} parent=11 // pred_check_branch
          %295 = sbr.rel (%p293) target = $region36
        $region35: #{tpu_custom_call.1} parent=11 // pred_region
          _
        $region36: #{tpu_custom_call.1} parent=11 // pred_fallthru
          _
        // Predicated region
        $region37: #{tpu_custom_call.1} parent=11 // pred_check
          %p296 = pneg %p211
        $region38: #{tpu_custom_call.1} parent=11 // pred_check_branch
          %298 = sbr.rel (%p296) target = $region40
        $region39: #{tpu_custom_call.1} parent=11 // pred_region
          _
        $region40: #{tpu_custom_call.1} parent=11 // pred_fallthru
          _
      $region12: #{tpu_custom_call.1} parent=5 // pred_fallthru
        _
      %p299 = scmp.lt.s32.totalorder %s21, 2
      // Predicated region
      $region41: #{tpu_custom_call.1} parent=5 // pred_check
        %p300 = pneg %p299
      $region42: #{tpu_custom_call.1} parent=5 // pred_check_branch
        %302 = sbr.rel (%p300) target = $region44
      $region43: #{tpu_custom_call.1} parent=5 // pred_region
        // Predicated region
        $region45: #{tpu_custom_call.1} parent=43 // pred_check
          %p303 = pneg %p53
        $region46: #{tpu_custom_call.1} parent=43 // pred_check_branch
          %305 = sbr.rel (%p303) target = $region48
        $region47: #{tpu_custom_call.1} parent=43 // pred_region
          %s306 = sand.u32 %s43, 1
          %s307 = scalar_lea.sflag [#allocation4], %s306
          %s308 = sand.u32 %s43, 1
          %s309 = smul.addr %s308, 8
          %s310 = scalar_lea.vmem [#allocation3], %s309
          %s312 = ssub.s32 128, 128
          %313 = vsyncadd %s307, %s312
          %s314 = smul.addr %s28, 128
          %s315 = scalar_lea.hbm %s0, %s314
          %s317 = sshll.u32 %s310, 4
          %s318 = int_to_ptr.vmem [resolvable:$true] %s317
          %320 = dma.hbm_to_vmem [thread:$0]  %s315, 128, %s318, %s307
        $region48: #{tpu_custom_call.1} parent=43 // pred_fallthru
          _
      $region44: #{tpu_custom_call.1} parent=5 // pred_fallthru
        _
      %p321 = scmp.le.s32.totalorder 1, %s21
      %p322 = scmp.lt.s32.totalorder %s21, 3
      %p323 = pnand %p321, %p322
      %p324 = pneg %p323
      // Predicated region
      $region49: #{tpu_custom_call.1} parent=5 // pred_check
        _
      $region50: #{tpu_custom_call.1} parent=5 // pred_check_branch
        %326 = sbr.rel (%p323) target = $region52
      $region51: #{tpu_custom_call.1} parent=5 // pred_region
        %s327 = ssub.s32 %s21, 1
        %s328 = sand.u32 %s46, 1
        %s329 = scalar_lea.sflag [#allocation4], %s328
        %s330 = sand.u32 %s46, 1
        %s331 = smul.addr %s330, 8
        %s332 = scalar_lea.vmem [#allocation3], %s331
        // Predicated region
        $region53: #{tpu_custom_call.1} parent=51 // pred_check
          %p333 = pneg %p59
        $region54: #{tpu_custom_call.1} parent=51 // pred_check_branch
          %335 = sbr.rel (%p333) target = $region56
        $region55: #{tpu_custom_call.1} parent=51 // pred_region
          %336 = dma.done %s329, 128
        $region56: #{tpu_custom_call.1} parent=51 // pred_fallthru
          _
        // Predicated region
        $region57: #{tpu_custom_call.1} parent=51 // pred_check
          %p337 = pneg %p127
        $region58: #{tpu_custom_call.1} parent=51 // pred_check_branch
          %339 = sbr.rel (%p337) target = $region60
        $region59: #{tpu_custom_call.1} parent=51 // pred_region
          %340 = dma.done [#allocation7], 2048
        $region60: #{tpu_custom_call.1} parent=51 // pred_fallthru
          _
        // Predicated region
        $region61: #{tpu_custom_call.1} parent=51 // pred_check
          %p341 = pneg %p148
        $region62: #{tpu_custom_call.1} parent=51 // pred_check_branch
          %343 = sbr.rel (%p341) target = $region64
        $region63: #{tpu_custom_call.1} parent=51 // pred_region
          %344 = dma.done [#allocation7], 2048
        $region64: #{tpu_custom_call.1} parent=51 // pred_fallthru
          _
        %s345 = sand.u32 %s46, 1
        %s346 = scalar_lea.sflag [#allocation4], %s345
        %s347 = sand.u32 %s46, 1
        %s348 = smul.addr %s347, 8
        %s349 = scalar_lea.vmem [#allocation3], %s348
        %p350 = pneg %p59
        %p351 = pneg %p56
        %p352 = pneg %p80
        %p353 = pneg %p77
        %p354 = scmp.lt.s32.totalorder %s31, 0
        %s355 = scalar_select %p354, %s31, 0
        %s356 = smul.addr %s355, 4
        %s357 = scalar_lea.vmem %s2, %s356
        %p358 = pneg %p106
        %p359 = pneg %p103
        %p360 = pneg %p127
        %p361 = pneg %p124
        %p362 = pneg %p148
        %p363 = pneg %p145
        %p364 = pneg %p169
        %p365 = pneg %p166
        %p366 = pneg %p190
        %p367 = pneg %p187
        %p368 = pneg %p211
        %p369 = pneg %p208
        %p370 = pneg %p239
        %p371 = pneg %p236
        %s372 = sand.u32 %s226, 1
        %s373 = scalar_lea.sflag [#allocation5], %s372
        %s374 = sand.u32 %s226, 1
        %s375 = smul.addr %s374, 8
        %s376 = scalar_lea.vmem [#allocation9], %s375
        %p377 = scmp.lt.s32.totalorder %s31, 0
        %s378 = scalar_select %p377, %s31, 0
        %s379 = smul.addr %s378, 4
        %s380 = scalar_lea.vmem %s2, %s379
        %p381 = scmp.eq.s32.totalorder %s31, 0
        // Predicated region
        $region65: #{tpu_custom_call.1} parent=51 // pred_check
          %p382 = pneg %p381
        $region66: #{tpu_custom_call.1} parent=51 // pred_check_branch
          %384 = sbr.rel (%p382) target = $region68
        $region67: #{tpu_custom_call.1} parent=51 // pred_region
          %v385 = vld [vmem:[%s332] sm:$0xff]
          %v386 = vld [vmem:[%s1] sm:$0x7f]
          %v388 = vcombine.high %v386, %v386
          %v390 = vunpack.c.l.s4 1966171168
          %v391 = vunpack.c.0.s8 %v390
          %v392 = vlaneseq
          %v393 = vshrl.u32 %v392, 7
          %v394 = vsub.s32 %v391, %v393
          %v395 = vrot.slane %v386, %v394
          %v397 = vunpack.c.l.s4 1966171168
          %v398 = vunpack.c.0.s8 %v397
          %v399 = vlaneseq
          %v400 = vshrl.u32 %v399, 7
          %v401 = vsub.s32 %v398, %v400
          %v402 = vrot.slane %v388, %v401
          %v403 = vcombine.high %v395, %v395
          %v404 = vcombine.high %v402, %v402
          %v406 = vunpack.c.l.s4 1966171168
          %v407 = vunpack.c.0.s8 %v406
          %v408 = vlaneseq
          %v409 = vshrl.u32 %v408, 7
          %v410 = vsub.s32 %v407, %v409
          %v411 = vrot.slane %v395, %v410
          %v413 = vunpack.c.l.s4 1966171168
          %v414 = vunpack.c.0.s8 %v413
          %v415 = vlaneseq
          %v416 = vshrl.u32 %v415, 7
          %v417 = vsub.s32 %v414, %v416
          %v418 = vrot.slane %v402, %v417
          %v420 = vunpack.c.l.s4 1966171168
          %v421 = vunpack.c.0.s8 %v420
          %v422 = vlaneseq
          %v423 = vshrl.u32 %v422, 7
          %v424 = vsub.s32 %v421, %v423
          %v425 = vrot.slane %v403, %v424
          %v427 = vunpack.c.l.s4 1966171168
          %v428 = vunpack.c.0.s8 %v427
          %v429 = vlaneseq
          %v430 = vshrl.u32 %v429, 7
          %v431 = vsub.s32 %v428, %v430
          %v432 = vrot.slane %v404, %v431
          %v433 = vcombine.high %v411, %v411
          %v434 = vcombine.high %v418, %v418
          %v435 = vcombine.high %v425, %v425
          %v436 = vlaneseq
          %v437 = vshrl.u32 %v436, 7
          %v438 = vsub.s32 0, %v437
          %v439 = vrot.slane %v411, %v438
          %v440 = vlaneseq
          %v441 = vshrl.u32 %v440, 7
          %v442 = vsub.s32 0, %v441
          %v443 = vrot.slane %v425, %v442
          %v444 = vlaneseq
          %v445 = vshrl.u32 %v444, 7
          %v446 = vsub.s32 0, %v445
          %v447 = vrot.slane %v433, %v446
          %v448 = vlaneseq
          %v449 = vshrl.u32 %v448, 7
          %v450 = vsub.s32 0, %v449
          %v451 = vrot.slane %v435, %v450
          %v452 = vlaneseq
          %v453 = vshrl.u32 %v452, 7
          %v454 = vsub.s32 0, %v453
          %v455 = vrot.slane %v418, %v454
          %v456 = vlaneseq
          %v457 = vshrl.u32 %v456, 7
          %v458 = vsub.s32 0, %v457
          %v459 = vrot.slane %v432, %v458
          %v460 = vlaneseq
          %v461 = vshrl.u32 %v460, 7
          %v462 = vsub.s32 0, %v461
          %v463 = vrot.slane %v434, %v462
          %v471 = vmul.f32 %v439, %v385
          %v472 = vmul.f32 %v443, %v385
          %v473 = vmul.f32 %v447, %v385
          %v474 = vmul.f32 %v451, %v385
          %v475 = vmul.f32 %v455, %v385
          %v476 = vmul.f32 %v459, %v385
          %v477 = vmul.f32 %v463, %v385
          %478 = vst [vmem:[#allocation2] sm:$0xff] %v471
          %479 = vst [vmem:[#allocation2 + $0x8] sm:$0xff] %v472
          %480 = vst [vmem:[#allocation2 + $0x10] sm:$0xff] %v473
          %481 = vst [vmem:[#allocation2 + $0x18] sm:$0xff] %v474
          %482 = vst [vmem:[#allocation2 + $0x20] sm:$0xff] %v475
          %483 = vst [vmem:[#allocation2 + $0x28] sm:$0xff] %v476
          %484 = vst [vmem:[#allocation2 + $0x30] sm:$0xff] %v477
        $region68: #{tpu_custom_call.1} parent=51 // pred_fallthru
          _
        %v485 = vld [vmem:[%s380] sm:$0xf]
        %v486 = vunpack.c.l.bf16 %v485
        %v487 = vld [vmem:[#allocation2] sm:$0xff]
        %v488 = vld [vmem:[#allocation2 + $0x8] sm:$0xff]
        %v489 = vld [vmem:[#allocation2 + $0x10] sm:$0xff]
        %v490 = vld [vmem:[#allocation2 + $0x18] sm:$0xff]
        %v491 = vld [vmem:[#allocation2 + $0x20] sm:$0xff]
        %v492 = vld [vmem:[#allocation2 + $0x28] sm:$0xff]
        %v493 = vld [vmem:[#allocation2 + $0x30] sm:$0xff]
        %vm494 = vcmask 457728
        %v496 = vsel %vm494, %v486, 0
        %498 = vmatprep.subr.mxu0 0.0
        %499 = vmatpush1.msra.mxu0 0.0
        %500 = vmatprep.subr.mxu0 0.0
        %501 = vmatpush1.msra.mxu0 0.0
        %502 = vmatprep.subr.mxu0 0.0
        %503 = vmatpush1.msra.mxu0 0.0
        %504 = vmatprep.subr.mxu0 0.0
        %505 = vmatpush1.msra.mxu0 0.0
        %506 = vmatprep.subr.mxu0 0.0
        %507 = vmatpush1.msra.mxu0 0.0
        %508 = vmatprep.subr.mxu0 0.0
        %509 = vmatpush1.msra.mxu0 0.0
        %510 = vmatprep.subr.mxu0 0.0
        %511 = vmatpush1.msra.mxu0 0.0
        %512 = vmatprep.subr.mxu0 0.0
        %513 = vmatpush1.msra.mxu0 0.0
        %514 = vmatprep.subr.mxu0 0.0
        %515 = vmatpush1.msra.mxu0 0.0
        %516 = vmatprep.subr.mxu0 0.0
        %517 = vmatpush1.msra.mxu0 %v493
        %518 = vmatprep.subr.mxu0 0.0
        %519 = vmatpush1.msra.mxu0 %v492
        %520 = vmatprep.subr.mxu0 0.0
        %521 = vmatpush1.msra.mxu0 %v491
        %522 = vmatprep.subr.mxu0 0.0
        %523 = vmatpush1.msra.mxu0 %v490
        %524 = vmatprep.subr.mxu0 0.0
        %525 = vmatpush1.msra.mxu0 %v489
        %526 = vmatprep.subr.mxu0 0.0
        %527 = vmatpush1.msra.mxu0 %v488
        %528 = vmatprep.subr.mxu0 0.0
        %529 = vmatpush1.msra.mxu0 %v487
        %530 = vmatprep.subr.mxu0 0.0
        %531 = vmatpush2.msra.mxu0 0.0
        %532 = vmatprep.subr.mxu0 0.0
        %533 = vmatpush2.msra.mxu0 0.0
        %534 = vmatprep.subr.mxu0 0.0
        %535 = vmatpush2.msra.mxu0 0.0
        %536 = vmatprep.subr.mxu0 0.0
        %537 = vmatpush2.msra.mxu0 0.0
        %538 = vmatprep.subr.mxu0 0.0
        %539 = vmatpush2.msra.mxu0 0.0
        %540 = vmatprep.subr.mxu0 0.0
        %541 = vmatpush2.msra.mxu0 0.0
        %542 = vmatprep.subr.mxu0 0.0
        %543 = vmatpush2.msra.mxu0 0.0
        %544 = vmatprep.subr.mxu0 0.0
        %545 = vmatpush2.msra.mxu0 0.0
        %546 = vmatprep.subr.mxu0 0.0
        %547 = vmatpush2.msra.mxu0 0.0
        %548 = vmatprep.subr.mxu0 0.0
        %549 = vmatpush2.msra.mxu0 0.0
        %550 = vmatprep.subr.mxu0 0.0
        %551 = vmatpush2.msra.mxu0 0.0
        %552 = vmatprep.subr.mxu0 0.0
        %553 = vmatpush2.msra.mxu0 0.0
        %554 = vmatprep.subr.mxu0 0.0
        %555 = vmatpush2.msra.mxu0 0.0
        %556 = vmatprep.subr.mxu0 0.0
        %557 = vmatpush2.msra.mxu0 0.0
        %558 = vmatprep.subr.mxu0 0.0
        %559 = vmatpush2.msra.mxu0 0.0
        %560 = vmatprep.subr.mxu0 0.0
        %561 = vmatpush2.msra.mxu0 0.0
        %562 = vmatprep.mubr.f32.mxu0 0.0
        %563 = vmatmul.mubr.f32.gmra.mxu0 %v496
        %v564 = vpop.f32.mrf.mxu0
        %v565 = vadd.f32 0.0, %v564
        %v566 = vpop.f32.mrf.mxu0
        %567 = vdwg.mxu0
        %s568 = smul.u32 %s31, 8
        %s569 = scalar_lea.vmem %s332, %s568 [#allocation3]
        %v570 = vld [vmem:[%s569] sm:$0xff]
        %v571 = vld [vmem:[#allocation6] sm:$0xff]
        %v572 = vld [vmem:[#allocation6 + $0x8] sm:$0xff]
        %v573 = vld [vmem:[#allocation6 + $0x10] sm:$0xff]
        %v574 = vld [vmem:[#allocation6 + $0x18] sm:$0xff]
        %v575 = vld [vmem:[#allocation6 + $0x20] sm:$0xff]
        %v576 = vld [vmem:[#allocation6 + $0x28] sm:$0xff]
        %v577 = vld [vmem:[#allocation6 + $0x30] sm:$0xff]
        %v578 = vld [vmem:[#allocation6 + $0x38] sm:$0xff]
        %v579 = vld [vmem:[#allocation6 + $0x40] sm:$0xff]
        %v580 = vld [vmem:[#allocation6 + $0x48] sm:$0xff]
        %v581 = vld [vmem:[#allocation6 + $0x50] sm:$0xff]
        %v582 = vld [vmem:[#allocation6 + $0x58] sm:$0xff]
        %v583 = vld [vmem:[#allocation6 + $0x60] sm:$0xff]
        %v584 = vld [vmem:[#allocation6 + $0x68] sm:$0xff]
        %v585 = vld [vmem:[#allocation6 + $0x70] sm:$0xff]
        %v586 = vld [vmem:[#allocation6 + $0x78] sm:$0xff]
        %v587 = vld [vmem:[#allocation8] sm:$0xff]
        %v588 = vld [vmem:[#allocation8 + $0x8] sm:$0xff]
        %v589 = vld [vmem:[#allocation8 + $0x10] sm:$0xff]
        %v590 = vld [vmem:[#allocation8 + $0x18] sm:$0xff]
        %v591 = vld [vmem:[#allocation8 + $0x20] sm:$0xff]
        %v592 = vld [vmem:[#allocation8 + $0x28] sm:$0xff]
        %v593 = vld [vmem:[#allocation8 + $0x30] sm:$0xff]
        %v594 = vld [vmem:[#allocation8 + $0x38] sm:$0xff]
        %v595 = vld [vmem:[#allocation8 + $0x40] sm:$0xff]
        %v596 = vld [vmem:[#allocation8 + $0x48] sm:$0xff]
        %v597 = vld [vmem:[#allocation8 + $0x50] sm:$0xff]
        %v598 = vld [vmem:[#allocation8 + $0x58] sm:$0xff]
        %v599 = vld [vmem:[#allocation8 + $0x60] sm:$0xff]
        %v600 = vld [vmem:[#allocation8 + $0x68] sm:$0xff]
        %v601 = vld [vmem:[#allocation8 + $0x70] sm:$0xff]
        %v602 = vld [vmem:[#allocation8 + $0x78] sm:$0xff]
        %603 = vmatprep.subr.mxu0 0.0
        %604 = vmatpush1.msra.mxu0 %v602
        %605 = vmatprep.subr.mxu0 0.0
        %606 = vmatpush1.msra.mxu0 %v601
        %607 = vmatprep.subr.mxu0 0.0
        %608 = vmatpush1.msra.mxu0 %v600
        %609 = vmatprep.subr.mxu0 0.0
        %610 = vmatpush1.msra.mxu0 %v599
        %611 = vmatprep.subr.mxu0 0.0
        %612 = vmatpush1.msra.mxu0 %v598
        %613 = vmatprep.subr.mxu0 0.0
        %614 = vmatpush1.msra.mxu0 %v597
        %615 = vmatprep.subr.mxu0 0.0
        %616 = vmatpush1.msra.mxu0 %v596
        %617 = vmatprep.subr.mxu0 0.0
        %618 = vmatpush1.msra.mxu0 %v595
        %619 = vmatprep.subr.mxu0 0.0
        %620 = vmatpush1.msra.mxu0 %v594
        %621 = vmatprep.subr.mxu0 0.0
        %622 = vmatpush1.msra.mxu0 %v593
        %623 = vmatprep.subr.mxu0 0.0
        %624 = vmatpush1.msra.mxu0 %v592
        %625 = vmatprep.subr.mxu0 0.0
        %626 = vmatpush1.msra.mxu0 %v591
        %627 = vmatprep.subr.mxu0 0.0
        %628 = vmatpush1.msra.mxu0 %v590
        %629 = vmatprep.subr.mxu0 0.0
        %630 = vmatpush1.msra.mxu0 %v589
        %631 = vmatprep.subr.mxu0 0.0
        %632 = vmatpush1.msra.mxu0 %v588
        %633 = vmatprep.subr.mxu0 0.0
        %634 = vmatpush1.msra.mxu0 %v587
        %635 = vmatprep.subr.mxu0 0.0
        %636 = vmatpush2.msra.mxu0 0.0
        %637 = vmatprep.subr.mxu0 0.0
        %638 = vmatpush2.msra.mxu0 0.0
        %639 = vmatprep.subr.mxu0 0.0
        %640 = vmatpush2.msra.mxu0 0.0
        %641 = vmatprep.subr.mxu0 0.0
        %642 = vmatpush2.msra.mxu0 0.0
        %643 = vmatprep.subr.mxu0 0.0
        %644 = vmatpush2.msra.mxu0 0.0
        %645 = vmatprep.subr.mxu0 0.0
        %646 = vmatpush2.msra.mxu0 0.0
        %647 = vmatprep.subr.mxu0 0.0
        %648 = vmatpush2.msra.mxu0 0.0
        %649 = vmatprep.subr.mxu0 0.0
        %650 = vmatpush2.msra.mxu0 0.0
        %651 = vmatprep.subr.mxu0 0.0
        %652 = vmatpush2.msra.mxu0 0.0
        %653 = vmatprep.subr.mxu0 0.0
        %654 = vmatpush2.msra.mxu0 0.0
        %655 = vmatprep.subr.mxu0 0.0
        %656 = vmatpush2.msra.mxu0 0.0
        %657 = vmatprep.subr.mxu0 0.0
        %658 = vmatpush2.msra.mxu0 0.0
        %659 = vmatprep.subr.mxu0 0.0
        %660 = vmatpush2.msra.mxu0 0.0
        %661 = vmatprep.subr.mxu0 0.0
        %662 = vmatpush2.msra.mxu0 0.0
        %663 = vmatprep.subr.mxu0 0.0
        %664 = vmatpush2.msra.mxu0 0.0
        %665 = vmatprep.subr.mxu0 0.0
        %666 = vmatpush2.msra.mxu0 0.0
        %667 = vmatprep.mubr.f32.mxu0 0.0
        %668 = vmatmul.mubr.f32.gmra.mxu0 %v565
        %v669 = vpop.f32.mrf.mxu0
        %v670 = vadd.f32 0.0, %v669
        %v671 = vpop.f32.mrf.mxu0
        %672 = vdwg.mxu0
        %673 = vmatprep.subr.mxu0 0.0
        %674 = vmatpush1.msra.mxu0 %v586
        %675 = vmatprep.subr.mxu0 0.0
        %676 = vmatpush1.msra.mxu0 %v585
        %677 = vmatprep.subr.mxu0 0.0
        %678 = vmatpush1.msra.mxu0 %v584
        %679 = vmatprep.subr.mxu0 0.0
        %680 = vmatpush1.msra.mxu0 %v583
        %681 = vmatprep.subr.mxu0 0.0
        %682 = vmatpush1.msra.mxu0 %v582
        %683 = vmatprep.subr.mxu0 0.0
        %684 = vmatpush1.msra.mxu0 %v581
        %685 = vmatprep.subr.mxu0 0.0
        %686 = vmatpush1.msra.mxu0 %v580
        %687 = vmatprep.subr.mxu0 0.0
        %688 = vmatpush1.msra.mxu0 %v579
        %689 = vmatprep.subr.mxu0 0.0
        %690 = vmatpush1.msra.mxu0 %v578
        %691 = vmatprep.subr.mxu0 0.0
        %692 = vmatpush1.msra.mxu0 %v577
        %693 = vmatprep.subr.mxu0 0.0
        %694 = vmatpush1.msra.mxu0 %v576
        %695 = vmatprep.subr.mxu0 0.0
        %696 = vmatpush1.msra.mxu0 %v575
        %697 = vmatprep.subr.mxu0 0.0
        %698 = vmatpush1.msra.mxu0 %v574
        %699 = vmatprep.subr.mxu0 0.0
        %700 = vmatpush1.msra.mxu0 %v573
        %701 = vmatprep.subr.mxu0 0.0
        %702 = vmatpush1.msra.mxu0 %v572
        %703 = vmatprep.subr.mxu0 0.0
        %704 = vmatpush1.msra.mxu0 %v571
        %705 = vmatprep.subr.mxu0 0.0
        %706 = vmatpush2.msra.mxu0 0.0
        %707 = vmatprep.subr.mxu0 0.0
        %708 = vmatpush2.msra.mxu0 0.0
        %709 = vmatprep.subr.mxu0 0.0
        %710 = vmatpush2.msra.mxu0 0.0
        %711 = vmatprep.subr.mxu0 0.0
        %712 = vmatpush2.msra.mxu0 0.0
        %713 = vmatprep.subr.mxu0 0.0
        %714 = vmatpush2.msra.mxu0 0.0
        %715 = vmatprep.subr.mxu0 0.0
        %716 = vmatpush2.msra.mxu0 0.0
        %717 = vmatprep.subr.mxu0 0.0
        %718 = vmatpush2.msra.mxu0 0.0
        %719 = vmatprep.subr.mxu0 0.0
        %720 = vmatpush2.msra.mxu0 0.0
        %721 = vmatprep.subr.mxu0 0.0
        %722 = vmatpush2.msra.mxu0 0.0
        %723 = vmatprep.subr.mxu0 0.0
        %724 = vmatpush2.msra.mxu0 0.0
        %725 = vmatprep.subr.mxu0 0.0
        %726 = vmatpush2.msra.mxu0 0.0
        %727 = vmatprep.subr.mxu0 0.0
        %728 = vmatpush2.msra.mxu0 0.0
        %729 = vmatprep.subr.mxu0 0.0
        %730 = vmatpush2.msra.mxu0 0.0
        %731 = vmatprep.subr.mxu0 0.0
        %732 = vmatpush2.msra.mxu0 0.0
        %733 = vmatprep.subr.mxu0 0.0
        %734 = vmatpush2.msra.mxu0 0.0
        %735 = vmatprep.subr.mxu0 0.0
        %736 = vmatpush2.msra.mxu0 0.0
        %737 = vmatprep.mubr.f32.mxu0 0.0
        %738 = vmatmul.mubr.f32.gmra.mxu0 %v570
        %v739 = vpop.f32.mrf.mxu0
        %v740 = vadd.f32 %v670, %v739
        %v741 = vpop.f32.mrf.mxu0
        %742 = vdwg.mxu0
        %v743 = vld [vmem:[%s5] sm:$0x1]
        %v745 = vlaneseq
        %v746 = vshrl.u32 %v745, 7
        %v747 = vsub.s32 0, %v746
        %v748 = vrot.slane %v743, %v747
        %v750 = vadd.f32 %v740, %v748
        %751 = vadd.xlane.f32.xlu0 %v750
        %v752 = vpop.xlane.xlu0 %751
        %v753 = vmul.f32 %v752, 0.03125
        %v754 = vmul.f32 %v750, %v750
        %755 = vadd.xlane.f32.xlu0 %v754
        %v756 = vpop.xlane.xlu0 %755
        %v757 = vmul.f32 %v756, 0.03125
        %v758 = vmul.f32 %v753, %v753
        %v759 = vsub.f32 %v757, %v758
        %v760 = vsub.f32 %v750, %v753
        %v761 = vadd.f32 %v759, 1e-05
        %v762 = vrsqrt.pop %v761
        %v763 = vmul.f32 %v760, %v762
        %v764 = vld [vmem:[%s6] sm:$0x1]
        %v766 = vlaneseq
        %v767 = vshrl.u32 %v766, 7
        %v768 = vsub.s32 0, %v767
        %v769 = vrot.slane %v764, %v768
        %v771 = vmul.f32 %v763, %v769
        %v772 = vld [vmem:[%s7] sm:$0x1]
        %v774 = vlaneseq
        %v775 = vshrl.u32 %v774, 7
        %v776 = vsub.s32 0, %v775
        %v777 = vrot.slane %v772, %v776
        %v779 = vadd.f32 %v771, %v777
        %v780 = vmax.f32 %v779, 0.0
        %v781 = vadd.f32 %v780, %v570
        %782 = vst [vmem:[%s376] sm:$0xff] %v781
        %s783 = sand.u32 %s226, 1
        %s784 = scalar_lea.sflag [#allocation5], %s783
        %s785 = sand.u32 %s226, 1
        %s786 = smul.addr %s785, 8
        %s787 = scalar_lea.vmem [#allocation9], %s786
        // Predicated region
        $region69: #{tpu_custom_call.1} parent=51 // pred_check
          %p788 = pneg %p236
        $region70: #{tpu_custom_call.1} parent=51 // pred_check_branch
          %790 = sbr.rel (%p788) target = $region72
        $region71: #{tpu_custom_call.1} parent=51 // pred_region
          %s792 = ssub.s32 128, 128
          %793 = vsyncadd %s784, %s792
          %s794 = sadd.s32 %s31, %s30
          %s795 = smul.addr %s794, 128
          %s796 = scalar_lea.hbm %s8, %s795
          %s798 = sshll.u32 %s787, 4
          %s799 = int_to_ptr.vmem [resolvable:$true] %s798
          %801 = dma.vmem_to_hbm [thread:$0]  %s799, 128, %s796, %s784
        $region72: #{tpu_custom_call.1} parent=51 // pred_fallthru
          _
      $region52: #{tpu_custom_call.1} parent=5 // pred_fallthru
        _
      %p802 = scmp.le.s32.totalorder 2, %s21
      // Predicated region
      $region73: #{tpu_custom_call.1} parent=5 // pred_check
        %p803 = pneg %p802
      $region74: #{tpu_custom_call.1} parent=5 // pred_check_branch
        %805 = sbr.rel (%p803) target = $region76
      $region75: #{tpu_custom_call.1} parent=5 // pred_region
        %s806 = ssub.s32 %s21, 2
        // Predicated region
        $region77: #{tpu_custom_call.1} parent=75 // pred_check
          %p807 = pneg %p242
        $region78: #{tpu_custom_call.1} parent=75 // pred_check_branch
          %809 = sbr.rel (%p807) target = $region80
        $region79: #{tpu_custom_call.1} parent=75 // pred_region
          %s810 = sand.u32 %s227, 1
          %s811 = scalar_lea.sflag [#allocation5], %s810
          %s812 = sand.u32 %s227, 1
          %s813 = smul.addr %s812, 8
          %s814 = scalar_lea.vmem [#allocation9], %s813
          %815 = dma.done %s811, 128
        $region80: #{tpu_custom_call.1} parent=75 // pred_fallthru
          _
      $region76: #{tpu_custom_call.1} parent=5 // pred_fallthru
        _
    $region6: #{tpu_custom_call.1} parent=1 // loop_footer
      %s25 = sadd.s32 1, %s21
    $region7: #{tpu_custom_call.1} parent=1 // loop_footer_branch
      %20 = sbr.rel target = $region3
    $region8: #{tpu_custom_call.1} parent=1 // loop_exit
      _
    %816 = vsyncpa [#allocation4], 1
    %s817 = scalar_lea.sflag [#allocation4], 1
    %818 = vsyncpa %s817, 1
    %819 = vsyncpa [#allocation7], 1
    %820 = vsyncpa [#allocation5], 1
    %s821 = scalar_lea.sflag [#allocation5], 1
    %822 = vsyncpa %s821, 1

</llo_original>
